<compile_context>
chip_gen: v7x
topology: tpu7x:2x2x1
jax: 0.10.0
libtpu: 0.0.40
codegen_flags: <defaults>
</compile_context>

<pallas_src>
import functools

import jax
import jax.numpy as jnp
from jax.experimental import pallas as pl
from jax.experimental.pallas import tpu as pltpu

_LANE = 128
_SUBLANE = 8


def _round_up(n, m):
  return ((n + m - 1) // m) * m


# ----------------------------------------------------------------------------
# Kernel
# ----------------------------------------------------------------------------
def _mlp_kernel(x_ref, w1, b1, w2, b2, w3, b3, w4, b4, wo, bo, out_ref):
  """Fused 5-layer MLP forward. BN scale/shift already folded into w/b."""
  x = x_ref[...]  # already in the weight dtype (cast once in the wrapper)

  def dense_relu(h, w, b):
    # MXU matmul with f32 accumulation; bias add + ReLU in f32 on the VPU.
    y = jnp.dot(h.astype(w.dtype), w[...], preferred_element_type=jnp.float32)
    return jnp.maximum(y + b[...], 0.0)

  h = dense_relu(x, w1, b1)   # layer_1 -> ReLU  (BN1 folded into layer_2)
  h = dense_relu(h, w2, b2)   # layer_2 -> ReLU  (BN2 folded into layer_3)
  h = dense_relu(h, w3, b3)   # layer_3 -> ReLU  (BN3 folded into layer_4)
  h = dense_relu(h, w4, b4)   # layer_4 -> ReLU  (BN4 folded into layer_out)
  # dropout(p=0.1) == identity in eval mode.

  # layer_out -> softmax over the class dim. Padded output columns carry
  # bias=-1e30, so exp(.)==0 there and the softmax over the lane-padded width
  # equals the softmax over the real classes.
  logits = jnp.dot(h.astype(wo.dtype), wo[...],
                   preferred_element_type=jnp.float32) + bo[...]
  m = jnp.max(logits, axis=-1, keepdims=True)
  e = jnp.exp(logits - m)
  # Reciprocal on the EUP slot (free relative to the store-heavy epilogue).
  inv = pl.reciprocal(jnp.sum(e, axis=-1, keepdims=True), approx=True)
  out_ref[...] = (e * inv).astype(out_ref.dtype)


# ----------------------------------------------------------------------------
# Parameter prep: fold eval-mode BatchNorm into the following Linear layer,
# zero-pad hidden widths to multiples of 128, lane-pad the output layer.
# ----------------------------------------------------------------------------
def fold_params(raw, *, weight_dtype=jnp.bfloat16):
  f32 = jnp.float32
  hidden_pad = {1: 256, 2: 128, 3: 256, 4: 128}  # 200/100/200/50 -> x128

  def fold_next(prev_li, w, b):
    # (h*s + t) @ W + b  ==  h @ (diag(s) W) + (t @ W + b)
    s = raw[f"s{prev_li}"].astype(f32)  # (1, d_in)
    t = raw[f"t{prev_li}"].astype(f32)  # (1, d_in)
    return w * s[0][:, None], t @ w + b

  def pad(w, b, rows, cols, bias_fill=0.0):
    wp = jnp.zeros((rows, cols), f32).at[: w.shape[0], : w.shape[1]].set(w)
    bp = jnp.full((1, cols), bias_fill, f32).at[:, : b.shape[1]].set(b)
    return wp, bp

  p = {}
  # Layer 1 is untouched by folding (its BN folds into layer 2).
  w, b = raw["w1"].astype(f32), raw["b1"].astype(f32)
  p["w1"], p["b1"] = pad(w, b, w.shape[0], hidden_pad[1])
  # Layers 2..4: fold the previous BN, then zero-pad rows/cols.
  for li in (2, 3, 4):
    w, b = fold_next(li - 1, raw[f"w{li}"].astype(f32),
                     raw[f"b{li}"].astype(f32))
    p[f"w{li}"], p[f"b{li}"] = pad(w, b, hidden_pad[li - 1], hidden_pad[li])
  # Output layer: fold BN4, lane-pad to a multiple of 128 columns with
  # bias=-1e30 on the padded columns (softmax of pads == 0).
  w, b = fold_next(4, raw["wo"].astype(f32), raw["bo"].astype(f32))
  out_class = w.shape[1]
  pad_out = max(_LANE, _round_up(out_class, _LANE))
  p["wo"], p["bo"] = pad(w, b, hidden_pad[4], pad_out, bias_fill=-1e30)

  # Cast weights last (fold done in f32); biases stay f32.
  for k in ("w1", "w2", "w3", "w4", "wo"):
    p[k] = p[k].astype(weight_dtype)
  return p, out_class


# ----------------------------------------------------------------------------
# Batch-tile selection
# ----------------------------------------------------------------------------
def _pick_batch_tile(batch, cap=2048):
  """Large tiles amortize the ~0.35us/grid-step overhead (v5e/v6e serial grid);
  big batches get an EVEN step count so both v7x TensorCores stay balanced."""
  pb = _round_up(max(batch, 1), _SUBLANE)
  if pb <= 1024:
    return pb                       # single step; too little work to split
  n = max(2, pl.cdiv(pb, cap))
  n += n % 2                        # even number of "parallel" grid steps
  return _round_up(pl.cdiv(pb, n), _SUBLANE)


# ----------------------------------------------------------------------------
# Wrapper: fold/pad/cast the parameters ONCE, return a jitted forward(x).
# ----------------------------------------------------------------------------
def make_mlp_forward(raw_params, *, weight_dtype=jnp.bfloat16,
                     out_dtype=jnp.float32, batch_tile=None):
  params, out_class = fold_params(raw_params, weight_dtype=weight_dtype)
  order = ("w1", "b1", "w2", "b2", "w3", "b3", "w4", "b4", "wo", "bo")
  param_arrays = tuple(params[k] for k in order)
  pad_out = params["bo"].shape[1]

  @functools.partial(jax.jit, static_argnums=(2,))
  def _run(x, flat_params, tile):
    batch, in_dim = x.shape
    # Cast the input stream once (halves HBM bytes for bf16 weights).
    x = x.astype(weight_dtype)
    padded_b = _round_up(batch, tile)
    if padded_b != batch:
      # Pad is at most tile-1 rows; garbage rows are sliced off below.
      x = jnp.pad(x, ((0, padded_b - batch), (0, 0)))

    def full_spec(arr):
      # Whole (2D) array resident every grid step; block index never changes,
      # so the weights are not re-DMA'd per step.
      return pl.BlockSpec(arr.shape, lambda i: (0, 0))

    in_specs = [pl.BlockSpec((tile, in_dim), lambda i: (i, 0))]
    in_specs += [full_spec(a) for a in flat_params]

    out = pl.pallas_call(
        _mlp_kernel,
        out_shape=jax.ShapeDtypeStruct((padded_b, pad_out), out_dtype),
        grid_spec=pltpu.PrefetchScalarGridSpec(
            num_scalar_prefetch=0,
            grid=(padded_b // tile,),
            in_specs=in_specs,
            out_specs=pl.BlockSpec((tile, pad_out), lambda i: (i, 0)),
        ),
        compiler_params=pltpu.CompilerParams(
            dimension_semantics=("parallel",),
        ),
    )(x, *flat_params)
    # NOTE: the column slice can be skipped if the consumer accepts the
    # lane-padded (B, 128) output (padded columns are exactly 0).
    return out[:batch, :out_class]

  def forward(x):
    tile = batch_tile if batch_tile is not None else _pick_batch_tile(x.shape[0])
    return _run(x, param_arrays, tile)

  return forward


def mlp_forward(x, raw_params, **kwargs):
  """One-shot convenience wrapper (prefer make_mlp_forward for repeated calls)."""
  return make_mlp_forward(raw_params, **kwargs)(x)


# ----------------------------------------------------------------------------
# Synthetic parameters + pure-JAX reference
# ----------------------------------------------------------------------------
def init_params(key, input_dim, output_class):
  """Deterministic synthetic parameters matching the PyTorch module shapes."""
  dims = [(input_dim, 200), (200, 100), (100, 200), (200, 50)]
  eps = 1e-5
  params = {}
  keys = jax.random.split(key, 17)
  ki = 0
  for li, (din, dout) in enumerate(dims, start=1):
    bound = 1.0 / jnp.sqrt(jnp.float32(din))
    params[f"w{li}"] = jax.random.uniform(
        keys[ki], (din, dout), jnp.float32, -bound, bound); ki += 1
    params[f"b{li}"] = jax.random.uniform(
        keys[ki], (1, dout), jnp.float32, -bound, bound); ki += 1
    # BatchNorm1d (eval): y = gamma*(x-mean)/sqrt(var+eps)+beta = x*scale+shift
    gamma = 1.0 + 0.1 * jax.random.normal(keys[ki], (1, dout), jnp.float32); ki += 1
    beta = 0.1 * jax.random.normal(keys[ki], (1, dout), jnp.float32); ki += 1
    run_mean = jnp.zeros((1, dout), jnp.float32)
    run_var = jnp.ones((1, dout), jnp.float32)
    scale = gamma / jnp.sqrt(run_var + eps)
    params[f"s{li}"] = scale
    params[f"t{li}"] = beta - run_mean * scale
  bound = 1.0 / jnp.sqrt(jnp.float32(50))
  k1, k2 = jax.random.split(keys[-1])
  params["wo"] = jax.random.uniform(
      k1, (50, output_class), jnp.float32, -bound, bound)
  params["bo"] = jax.random.uniform(
      k2, (1, output_class), jnp.float32, -bound, bound)
  return params


def reference_forward(x, p):
  """Pure-JAX f32 reference (un-folded BN, un-padded), for a sanity check."""
  h = jnp.maximum(x @ p["w1"] + p["b1"], 0.0) * p["s1"] + p["t1"]
  h = jnp.maximum(h @ p["w2"] + p["b2"], 0.0) * p["s2"] + p["t2"]
  h = jnp.maximum(h @ p["w3"] + p["b3"], 0.0) * p["s3"] + p["t3"]
  h = jnp.maximum(h @ p["w4"] + p["b4"], 0.0) * p["s4"] + p["t4"]
  logits = h @ p["wo"] + p["bo"]
  return jax.nn.softmax(logits, axis=-1)


if __name__ == "__main__":
  input_dim = 32
  output_class = 6
  batch = 16

  key = jax.random.PRNGKey(0)
  kx, kp = jax.random.split(key)
  x = jax.random.normal(kx, (batch, input_dim), jnp.float32)
  params = init_params(kp, input_dim, output_class)

  ref = reference_forward(x, params)

  # f32-weight path: checks the folded-BN / padded-softmax math (tolerance
  # allows the approx-reciprocal softmax normalization).
  fwd_f32 = make_mlp_forward(params, weight_dtype=jnp.float32)
  out_f32 = jax.block_until_ready(fwd_f32(x))
  assert out_f32.shape == (batch, output_class)
  assert jnp.allclose(out_f32, ref, atol=2e-3, rtol=2e-3), "f32 mismatch vs reference"
  assert jnp.allclose(jnp.sum(out_f32, axis=-1), 1.0, atol=5e-3)

  # Default bf16-weight path (perf config for v6e/v7x): looser tolerance.
  fwd_bf16 = make_mlp_forward(params)
  out_bf16 = jax.block_until_ready(fwd_bf16(x))
  assert out_bf16.shape == (batch, output_class)
  assert jnp.allclose(out_bf16, ref, atol=2e-2), "bf16 mismatch vs reference"
  assert jnp.allclose(jnp.sum(out_bf16, axis=-1), 1.0, atol=5e-3)

  print("KERNEL_OK")
</pallas_src>

<mosaic_0001>
module attributes {stable_mosaic.version = 11 : i64} {
  func.func @_mlp_kernel(%arg0: i32, %arg1: memref<16x32xf32, #tpu.memory_space<vmem>>, %arg2: memref<32x256xf32, #tpu.memory_space<vmem>>, %arg3: memref<1x256xf32, #tpu.memory_space<vmem>>, %arg4: memref<256x128xf32, #tpu.memory_space<vmem>>, %arg5: memref<1x128xf32, #tpu.memory_space<vmem>>, %arg6: memref<128x256xf32, #tpu.memory_space<vmem>>, %arg7: memref<1x256xf32, #tpu.memory_space<vmem>>, %arg8: memref<256x128xf32, #tpu.memory_space<vmem>>, %arg9: memref<1x128xf32, #tpu.memory_space<vmem>>, %arg10: memref<128x128xf32, #tpu.memory_space<vmem>>, %arg11: memref<1x128xf32, #tpu.memory_space<vmem>>, %arg12: memref<16x128xf32, #tpu.memory_space<vmem>>) attributes {dimension_semantics = [#tpu.dimension_semantics<parallel>], iteration_bounds = array<i64: 1>, scalar_prefetch = 0 : i64, scratch_operands = 0 : i64, tpu.core_type = #tpu.core_type<tc>, window_params = [{transform_indices = @transform_0, window_bounds = array<i64: 16, 32>}, {pipeline_mode = #tpu.pipeline_mode<synchronous>, transform_indices = @transform_1, window_bounds = array<i64: 32, 256>}, {pipeline_mode = #tpu.pipeline_mode<synchronous>, transform_indices = @transform_2, window_bounds = array<i64: 1, 256>}, {pipeline_mode = #tpu.pipeline_mode<synchronous>, transform_indices = @transform_3, window_bounds = array<i64: 256, 128>}, {pipeline_mode = #tpu.pipeline_mode<synchronous>, transform_indices = @transform_4, window_bounds = array<i64: 1, 128>}, {pipeline_mode = #tpu.pipeline_mode<synchronous>, transform_indices = @transform_5, window_bounds = array<i64: 128, 256>}, {pipeline_mode = #tpu.pipeline_mode<synchronous>, transform_indices = @transform_6, window_bounds = array<i64: 1, 256>}, {pipeline_mode = #tpu.pipeline_mode<synchronous>, transform_indices = @transform_7, window_bounds = array<i64: 256, 128>}, {pipeline_mode = #tpu.pipeline_mode<synchronous>, transform_indices = @transform_8, window_bounds = array<i64: 1, 128>}, {pipeline_mode = #tpu.pipeline_mode<synchronous>, transform_indices = @transform_9, window_bounds = array<i64: 128, 128>}, {pipeline_mode = #tpu.pipeline_mode<synchronous>, transform_indices = @transform_10, window_bounds = array<i64: 1, 128>}, {transform_indices = @transform_11, window_bounds = array<i64: 16, 128>}]} {
    %c0 = arith.constant 0 : index
    %c0_0 = arith.constant 0 : index
    %0 = vector.load %arg1[%c0, %c0_0] : memref<16x32xf32, #tpu.memory_space<vmem>>, vector<16x32xf32>
    %c0_1 = arith.constant 0 : index
    %c0_2 = arith.constant 0 : index
    %1 = vector.load %arg2[%c0_1, %c0_2] : memref<32x256xf32, #tpu.memory_space<vmem>>, vector<32x256xf32>
    %cst = arith.constant dense<0.000000e+00> : vector<16x256xf32>
    %2 = tpu.matmul %0, %1, %cst {dimension_numbers = #tpu.dot_dimension_numbers<[1], [0], [0], [1], [0, 0, 1, 1], [], []>} : vector<16x32xf32>, vector<32x256xf32>, vector<16x256xf32> -> vector<16x256xf32>
    %c0_3 = arith.constant 0 : index
    %c0_4 = arith.constant 0 : index
    %3 = vector.load %arg3[%c0_3, %c0_4] : memref<1x256xf32, #tpu.memory_space<vmem>>, vector<1x256xf32>
    %4 = vector.broadcast %3 : vector<1x256xf32> to vector<16x256xf32>
    %5 = arith.addf %2, %4 : vector<16x256xf32>
    %cst_5 = arith.constant 0.000000e+00 : f32
    %6 = vector.broadcast %cst_5 : f32 to vector<16x256xf32>
    %7 = arith.maximumf %5, %6 : vector<16x256xf32>
    %c0_6 = arith.constant 0 : index
    %c0_7 = arith.constant 0 : index
    %8 = vector.load %arg4[%c0_6, %c0_7] : memref<256x128xf32, #tpu.memory_space<vmem>>, vector<256x128xf32>
    %cst_8 = arith.constant dense<0.000000e+00> : vector<16x128xf32>
    %9 = tpu.matmul %7, %8, %cst_8 {dimension_numbers = #tpu.dot_dimension_numbers<[1], [0], [0], [1], [0, 0, 1, 1], [], []>} : vector<16x256xf32>, vector<256x128xf32>, vector<16x128xf32> -> vector<16x128xf32>
    %c0_9 = arith.constant 0 : index
    %c0_10 = arith.constant 0 : index
    %10 = vector.load %arg5[%c0_9, %c0_10] : memref<1x128xf32, #tpu.memory_space<vmem>>, vector<1x128xf32>
    %11 = vector.broadcast %10 : vector<1x128xf32> to vector<16x128xf32>
    %12 = arith.addf %9, %11 : vector<16x128xf32>
    %cst_11 = arith.constant 0.000000e+00 : f32
    %13 = vector.broadcast %cst_11 : f32 to vector<16x128xf32>
    %14 = arith.maximumf %12, %13 : vector<16x128xf32>
    %c0_12 = arith.constant 0 : index
    %c0_13 = arith.constant 0 : index
    %15 = vector.load %arg6[%c0_12, %c0_13] : memref<128x256xf32, #tpu.memory_space<vmem>>, vector<128x256xf32>
    %cst_14 = arith.constant dense<0.000000e+00> : vector<16x256xf32>
    %16 = tpu.matmul %14, %15, %cst_14 {dimension_numbers = #tpu.dot_dimension_numbers<[1], [0], [0], [1], [0, 0, 1, 1], [], []>} : vector<16x128xf32>, vector<128x256xf32>, vector<16x256xf32> -> vector<16x256xf32>
    %c0_15 = arith.constant 0 : index
    %c0_16 = arith.constant 0 : index
    %17 = vector.load %arg7[%c0_15, %c0_16] : memref<1x256xf32, #tpu.memory_space<vmem>>, vector<1x256xf32>
    %18 = vector.broadcast %17 : vector<1x256xf32> to vector<16x256xf32>
    %19 = arith.addf %16, %18 : vector<16x256xf32>
    %cst_17 = arith.constant 0.000000e+00 : f32
    %20 = vector.broadcast %cst_17 : f32 to vector<16x256xf32>
    %21 = arith.maximumf %19, %20 : vector<16x256xf32>
    %c0_18 = arith.constant 0 : index
    %c0_19 = arith.constant 0 : index
    %22 = vector.load %arg8[%c0_18, %c0_19] : memref<256x128xf32, #tpu.memory_space<vmem>>, vector<256x128xf32>
    %cst_20 = arith.constant dense<0.000000e+00> : vector<16x128xf32>
    %23 = tpu.matmul %21, %22, %cst_20 {dimension_numbers = #tpu.dot_dimension_numbers<[1], [0], [0], [1], [0, 0, 1, 1], [], []>} : vector<16x256xf32>, vector<256x128xf32>, vector<16x128xf32> -> vector<16x128xf32>
    %c0_21 = arith.constant 0 : index
    %c0_22 = arith.constant 0 : index
    %24 = vector.load %arg9[%c0_21, %c0_22] : memref<1x128xf32, #tpu.memory_space<vmem>>, vector<1x128xf32>
    %25 = vector.broadcast %24 : vector<1x128xf32> to vector<16x128xf32>
    %26 = arith.addf %23, %25 : vector<16x128xf32>
    %cst_23 = arith.constant 0.000000e+00 : f32
    %27 = vector.broadcast %cst_23 : f32 to vector<16x128xf32>
    %28 = arith.maximumf %26, %27 : vector<16x128xf32>
    %c0_24 = arith.constant 0 : index
    %c0_25 = arith.constant 0 : index
    %29 = vector.load %arg10[%c0_24, %c0_25] : memref<128x128xf32, #tpu.memory_space<vmem>>, vector<128x128xf32>
    %cst_26 = arith.constant dense<0.000000e+00> : vector<16x128xf32>
    %30 = tpu.matmul %28, %29, %cst_26 {dimension_numbers = #tpu.dot_dimension_numbers<[1], [0], [0], [1], [0, 0, 1, 1], [], []>} : vector<16x128xf32>, vector<128x128xf32>, vector<16x128xf32> -> vector<16x128xf32>
    %c0_27 = arith.constant 0 : index
    %c0_28 = arith.constant 0 : index
    %31 = vector.load %arg11[%c0_27, %c0_28] : memref<1x128xf32, #tpu.memory_space<vmem>>, vector<1x128xf32>
    %32 = vector.broadcast %31 : vector<1x128xf32> to vector<16x128xf32>
    %33 = arith.addf %30, %32 : vector<16x128xf32>
    %cst_29 = arith.constant dense<0xFF800000> : vector<16xf32>
    %34 = vector.multi_reduction <maximumf>, %33, %cst_29 [1] : vector<16x128xf32> to vector<16xf32>
    %35 = vector.shape_cast %34 : vector<16xf32> to vector<16x1xf32>
    %36 = vector.broadcast %35 : vector<16x1xf32> to vector<16x128xf32>
    %37 = arith.subf %33, %36 : vector<16x128xf32>
    %38 = math.exp %37 : vector<16x128xf32>
    %cst_30 = arith.constant dense<0.000000e+00> : vector<16xf32>
    %39 = vector.multi_reduction <add>, %38, %cst_30 [1] : vector<16x128xf32> to vector<16xf32>
    %40 = vector.shape_cast %39 : vector<16xf32> to vector<16x1xf32>
    %41 = tpu.reciprocal %40 {approx = true} : vector<16x1xf32> -> vector<16x1xf32>
    %42 = vector.broadcast %41 : vector<16x1xf32> to vector<16x128xf32>
    %43 = arith.mulf %38, %42 : vector<16x128xf32>
    %c0_31 = arith.constant 0 : index
    %c0_32 = arith.constant 0 : index
    %44 = vector.load %arg12[%c0_31, %c0_32] : memref<16x128xf32, #tpu.memory_space<vmem>>, vector<16x128xf32>
    tpu.vector_store %arg12[%c0_31, %c0_32], %43 {strides = array<i32>} : memref<16x128xf32, #tpu.memory_space<vmem>>, vector<16x128xf32>,
    return
  }
  func.func @transform_0(%arg0: i32) -> (i32, i32) {
    %c0_i32 = arith.constant 0 : i32
    %c0_i32_0 = arith.constant 0 : i32
    return %arg0, %c0_i32 : i32, i32
  }
  func.func @transform_1(%arg0: i32) -> (i32, i32) {
    %c0_i32 = arith.constant 0 : i32
    %c0_i32_0 = arith.constant 0 : i32
    %c0_i32_1 = arith.constant 0 : i32
    return %c0_i32, %c0_i32_0 : i32, i32
  }
  func.func @transform_2(%arg0: i32) -> (i32, i32) {
    %c0_i32 = arith.constant 0 : i32
    %c0_i32_0 = arith.constant 0 : i32
    %c0_i32_1 = arith.constant 0 : i32
    return %c0_i32, %c0_i32_0 : i32, i32
  }
  func.func @transform_3(%arg0: i32) -> (i32, i32) {
    %c0_i32 = arith.constant 0 : i32
    %c0_i32_0 = arith.constant 0 : i32
    %c0_i32_1 = arith.constant 0 : i32
    return %c0_i32, %c0_i32_0 : i32, i32
  }
  func.func @transform_4(%arg0: i32) -> (i32, i32) {
    %c0_i32 = arith.constant 0 : i32
    %c0_i32_0 = arith.constant 0 : i32
    %c0_i32_1 = arith.constant 0 : i32
    return %c0_i32, %c0_i32_0 : i32, i32
  }
  func.func @transform_5(%arg0: i32) -> (i32, i32) {
    %c0_i32 = arith.constant 0 : i32
    %c0_i32_0 = arith.constant 0 : i32
    %c0_i32_1 = arith.constant 0 : i32
    return %c0_i32, %c0_i32_0 : i32, i32
  }
  func.func @transform_6(%arg0: i32) -> (i32, i32) {
    %c0_i32 = arith.constant 0 : i32
    %c0_i32_0 = arith.constant 0 : i32
    %c0_i32_1 = arith.constant 0 : i32
    return %c0_i32, %c0_i32_0 : i32, i32
  }
  func.func @transform_7(%arg0: i32) -> (i32, i32) {
    %c0_i32 = arith.constant 0 : i32
    %c0_i32_0 = arith.constant 0 : i32
    %c0_i32_1 = arith.constant 0 : i32
    return %c0_i32, %c0_i32_0 : i32, i32
  }
  func.func @transform_8(%arg0: i32) -> (i32, i32) {
    %c0_i32 = arith.constant 0 : i32
    %c0_i32_0 = arith.constant 0 : i32
    %c0_i32_1 = arith.constant 0 : i32
    return %c0_i32, %c0_i32_0 : i32, i32
  }
  func.func @transform_9(%arg0: i32) -> (i32, i32) {
    %c0_i32 = arith.constant 0 : i32
    %c0_i32_0 = arith.constant 0 : i32
    %c0_i32_1 = arith.constant 0 : i32
    return %c0_i32, %c0_i32_0 : i32, i32
  }
  func.func @transform_10(%arg0: i32) -> (i32, i32) {
    %c0_i32 = arith.constant 0 : i32
    %c0_i32_0 = arith.constant 0 : i32
    %c0_i32_1 = arith.constant 0 : i32
    return %c0_i32, %c0_i32_0 : i32, i32
  }
  func.func @transform_11(%arg0: i32) -> (i32, i32) {
    %c0_i32 = arith.constant 0 : i32
    %c0_i32_0 = arith.constant 0 : i32
    return %arg0, %c0_i32 : i32, i32
  }
}

</mosaic_0001>

<llo_original>
// kernel: _run.1
$region0: #{_run.1}
  #allocation0 [shape = 'u32[]', space=smem, size = 0x4, offset = 0x4, fixed_abs, tag = 'smem constant byte address 0x4 - core index']
  #allocation1 [shape = 'u32[144,128]{1,0:T(1,128)}', space=vmem, size = 0x12000, scoped, tag = 'internal scratch']
  %s0 = inlined_call_operand.hbm [shape: f32[16,32], index: 0, kind: input, shape index: {}]
  %s1 = inlined_call_operand.hbm [shape: f32[32,256], index: 1, kind: input, shape index: {}]
  %s2 = inlined_call_operand.vmem [shape: f32[1,256], index: 2, kind: input, shape index: {}]
  %s3 = inlined_call_operand.hbm [shape: f32[256,128], index: 3, kind: input, shape index: {}]
  %s4 = inlined_call_operand.vmem [shape: f32[1,128], index: 4, kind: input, shape index: {}]
  %s5 = inlined_call_operand.hbm [shape: f32[128,256], index: 5, kind: input, shape index: {}]
  %s6 = inlined_call_operand.vmem [shape: f32[1,256], index: 6, kind: input, shape index: {}]
  %s7 = inlined_call_operand.hbm [shape: f32[256,128], index: 7, kind: input, shape index: {}]
  %s8 = inlined_call_operand.vmem [shape: f32[1,128], index: 8, kind: input, shape index: {}]
  %s9 = inlined_call_operand.hbm [shape: f32[128,128], index: 9, kind: input, shape index: {}]
  %s10 = inlined_call_operand.vmem [shape: f32[1,128], index: 10, kind: input, shape index: {}]
  %s11 = inlined_call_operand.vmem [shape: f32[16,128], index: 11, kind: output, shape index: {}]
  %s12 = sld [smem:[#allocation0]]
  $region78: #{_run.1} parent=0
    _
  %s14 = ssub.s32 1, %s12
  %s15 = scalar_select 0, %s14, %s12
  $region1: #{_run.1} parent=0
    #allocation2 [shape = 'u8[8192]{0}', space=vmem, size = 0x2000, scoped, tag = 'input window, operand 0, single buffered']
    #allocation3 [shape = 's32[1]{0}', space=sflag, size = 0x4, scoped, tag = 'scoped memory for _run.1']
    #allocation4 [shape = 'u8[32768]{0}', space=vmem, size = 0x8000, scoped, tag = 'input window, operand 1, single buffered']
    #allocation5 [shape = 's32[1]{0}', space=sflag, size = 0x4, scoped, tag = 'scoped memory for _run.1']
    #allocation6 [shape = 'u8[131072]{0}', space=vmem, size = 0x20000, scoped, tag = 'input window, operand 3, single buffered']
    #allocation7 [shape = 'u8[131072]{0}', space=vmem, size = 0x20000, scoped, tag = 'input window, operand 5, single buffered']
    #allocation8 [shape = 's32[1]{0}', space=sflag, size = 0x4, scoped, tag = 'scoped memory for _run.1']
    #allocation9 [shape = 'u8[131072]{0}', space=vmem, size = 0x20000, scoped, tag = 'input window, operand 7, single buffered']
    #allocation10 [shape = 'u8[65536]{0}', space=vmem, size = 0x10000, scoped, tag = 'input window, operand 9, single buffered']
    #allocation11 [shape = 's32[1]{0}', space=sflag, size = 0x4, scoped, tag = 'scoped memory for _run.1']
    %16 = vsyncpa [#allocation3], 0
    %17 = vsyncpa [#allocation5], 0
    %18 = vsyncpa [#allocation8], 0
    %19 = vsyncpa [#allocation11], 0
    // Predicated region
    $region2: #{_run.1} parent=1 // pred_check
      _
    $region3: #{_run.1} parent=1 // pred_check_branch
      %21 = sbr.rel (0) target = $region5
    $region4: #{_run.1} parent=1 // pred_region
      %s23 = ssub.s32 256, 256
      %24 = vsyncadd [#allocation3], %s23
      %s25 = sshll.u32 [#allocation2], 4
      %s26 = int_to_ptr.vmem [resolvable:$true] %s25
      %31 = dma.hbm_to_vmem [thread:$0]  %s0, 256, %s26, [#allocation3], 128, 128, 8
    $region5: #{_run.1} parent=1 // pred_fallthru
      _
    // Predicated region
    $region6: #{_run.1} parent=1 // pred_check
      _
    $region7: #{_run.1} parent=1 // pred_check_branch
      %33 = sbr.rel (0) target = $region9
    $region8: #{_run.1} parent=1 // pred_region
      %s35 = ssub.s32 1024, 1024
      %36 = vsyncadd [#allocation5], %s35
      %s37 = sshll.u32 [#allocation4], 4
      %s38 = int_to_ptr.vmem [resolvable:$true] %s37
      %43 = dma.hbm_to_vmem [thread:$0]  %s1, 1024, %s38, [#allocation5], 256, 256, 16
    $region9: #{_run.1} parent=1 // pred_fallthru
      _
    // Predicated region
    $region10: #{_run.1} parent=1 // pred_check
      _
    $region11: #{_run.1} parent=1 // pred_check_branch
      %45 = sbr.rel (0) target = $region13
    $region12: #{_run.1} parent=1 // pred_region
      _
    $region13: #{_run.1} parent=1 // pred_fallthru
      _
    // Predicated region
    $region14: #{_run.1} parent=1 // pred_check
      _
    $region15: #{_run.1} parent=1 // pred_check_branch
      %47 = sbr.rel (0) target = $region17
    $region16: #{_run.1} parent=1 // pred_region
      %s49 = ssub.s32 4096, 4096
      %50 = vsyncadd [#allocation5], %s49
      %s51 = sshll.u32 [#allocation6], 4
      %s52 = int_to_ptr.vmem [resolvable:$true] %s51
      %57 = dma.hbm_to_vmem [thread:$0]  %s3, 4096, %s52, [#allocation5], 128, 128, 8
    $region17: #{_run.1} parent=1 // pred_fallthru
      _
    // Predicated region
    $region18: #{_run.1} parent=1 // pred_check
      _
    $region19: #{_run.1} parent=1 // pred_check_branch
      %59 = sbr.rel (0) target = $region21
    $region20: #{_run.1} parent=1 // pred_region
      _
    $region21: #{_run.1} parent=1 // pred_fallthru
      _
    // Predicated region
    $region22: #{_run.1} parent=1 // pred_check
      _
    $region23: #{_run.1} parent=1 // pred_check_branch
      %61 = sbr.rel (0) target = $region25
    $region24: #{_run.1} parent=1 // pred_region
      %s63 = ssub.s32 4096, 4096
      %64 = vsyncadd [#allocation8], %s63
      %s65 = sshll.u32 [#allocation7], 4
      %s66 = int_to_ptr.vmem [resolvable:$true] %s65
      %71 = dma.hbm_to_vmem [thread:$0]  %s5, 4096, %s66, [#allocation8], 256, 256, 16
    $region25: #{_run.1} parent=1 // pred_fallthru
      _
    // Predicated region
    $region26: #{_run.1} parent=1 // pred_check
      _
    $region27: #{_run.1} parent=1 // pred_check_branch
      %73 = sbr.rel (0) target = $region29
    $region28: #{_run.1} parent=1 // pred_region
      _
    $region29: #{_run.1} parent=1 // pred_fallthru
      _
    // Predicated region
    $region30: #{_run.1} parent=1 // pred_check
      _
    $region31: #{_run.1} parent=1 // pred_check_branch
      %75 = sbr.rel (0) target = $region33
    $region32: #{_run.1} parent=1 // pred_region
      %s77 = ssub.s32 4096, 4096
      %78 = vsyncadd [#allocation8], %s77
      %s79 = sshll.u32 [#allocation9], 4
      %s80 = int_to_ptr.vmem [resolvable:$true] %s79
      %85 = dma.hbm_to_vmem [thread:$0]  %s7, 4096, %s80, [#allocation8], 128, 128, 8
    $region33: #{_run.1} parent=1 // pred_fallthru
      _
    // Predicated region
    $region34: #{_run.1} parent=1 // pred_check
      _
    $region35: #{_run.1} parent=1 // pred_check_branch
      %87 = sbr.rel (0) target = $region37
    $region36: #{_run.1} parent=1 // pred_region
      _
    $region37: #{_run.1} parent=1 // pred_fallthru
      _
    // Predicated region
    $region38: #{_run.1} parent=1 // pred_check
      _
    $region39: #{_run.1} parent=1 // pred_check_branch
      %89 = sbr.rel (0) target = $region41
    $region40: #{_run.1} parent=1 // pred_region
      %s91 = ssub.s32 2048, 2048
      %92 = vsyncadd [#allocation11], %s91
      %s93 = sshll.u32 [#allocation10], 4
      %s94 = int_to_ptr.vmem [resolvable:$true] %s93
      %99 = dma.hbm_to_vmem [thread:$0]  %s9, 2048, %s94, [#allocation11], 128, 128, 8
    $region41: #{_run.1} parent=1 // pred_fallthru
      _
    // Predicated region
    $region42: #{_run.1} parent=1 // pred_check
      _
    $region43: #{_run.1} parent=1 // pred_check_branch
      %101 = sbr.rel (0) target = $region45
    $region44: #{_run.1} parent=1 // pred_region
      _
    $region45: #{_run.1} parent=1 // pred_fallthru
      _
    // Predicated region
    $region46: #{_run.1} parent=1 // pred_check
      _
    $region47: #{_run.1} parent=1 // pred_check_branch
      %103 = sbr.rel (0) target = $region49
    $region48: #{_run.1} parent=1 // pred_region
      %104 = dma.done [#allocation3], 256
    $region49: #{_run.1} parent=1 // pred_fallthru
      _
    // Predicated region
    $region50: #{_run.1} parent=1 // pred_check
      _
    $region51: #{_run.1} parent=1 // pred_check_branch
      %106 = sbr.rel (0) target = $region53
    $region52: #{_run.1} parent=1 // pred_region
      %107 = dma.done [#allocation5], 1024
    $region53: #{_run.1} parent=1 // pred_fallthru
      _
    // Predicated region
    $region54: #{_run.1} parent=1 // pred_check
      _
    $region55: #{_run.1} parent=1 // pred_check_branch
      %109 = sbr.rel (0) target = $region57
    $region56: #{_run.1} parent=1 // pred_region
      %110 = dma.done [#allocation5], 4096
    $region57: #{_run.1} parent=1 // pred_fallthru
      _
    // Predicated region
    $region58: #{_run.1} parent=1 // pred_check
      _
    $region59: #{_run.1} parent=1 // pred_check_branch
      %112 = sbr.rel (0) target = $region61
    $region60: #{_run.1} parent=1 // pred_region
      %113 = dma.done [#allocation8], 4096
    $region61: #{_run.1} parent=1 // pred_fallthru
      _
    // Predicated region
    $region62: #{_run.1} parent=1 // pred_check
      _
    $region63: #{_run.1} parent=1 // pred_check_branch
      %115 = sbr.rel (0) target = $region65
    $region64: #{_run.1} parent=1 // pred_region
      %116 = dma.done [#allocation8], 4096
    $region65: #{_run.1} parent=1 // pred_fallthru
      _
    // Predicated region
    $region66: #{_run.1} parent=1 // pred_check
      _
    $region67: #{_run.1} parent=1 // pred_check_branch
      %118 = sbr.rel (0) target = $region69
    $region68: #{_run.1} parent=1 // pred_region
      %119 = dma.done [#allocation11], 2048
    $region69: #{_run.1} parent=1 // pred_fallthru
      _
    %v120 = vld [vmem:[#allocation2] sm:$0xff]
    %v121 = vld [vmem:[#allocation2 + $0x8] sm:$0xff]
    %v122 = vld [vmem:[#allocation4] sm:$0xff]
    %v123 = vld [vmem:[#allocation4 + $0x8] sm:$0xff]
    %v124 = vld [vmem:[#allocation4 + $0x10] sm:$0xff]
    %v125 = vld [vmem:[#allocation4 + $0x18] sm:$0xff]
    %v126 = vld [vmem:[#allocation4 + $0x20] sm:$0xff]
    %v127 = vld [vmem:[#allocation4 + $0x28] sm:$0xff]
    %v128 = vld [vmem:[#allocation4 + $0x30] sm:$0xff]
    %v129 = vld [vmem:[#allocation4 + $0x38] sm:$0xff]
    %v130 = vld [vmem:[%s2] sm:$0x3]
    %v132 = vlaneseq
    %v133 = vshrl.u32 %v132, 7
    %v134 = vsub.s32 0, %v133
    %v135 = vrot.slane %v130, %v134
    %v136 = vlaneseq
    %v137 = vshrl.u32 %v136, 7
    %v138 = vsub.s32 1, %v137
    %v139 = vrot.slane %v130, %v138
    %vm142 = vcmask 261120
    %v144 = vsel %vm142, %v120, 0
    %v147 = vsel %vm142, %v121, 0
    %149 = vmatprep.subr.mxu0 %v123
    %150 = vmatpush1.msra.mxu0 %v122
    %151 = vmatprep.subr.mxu0 %v125
    %152 = vmatpush1.msra.mxu0 %v124
    %153 = vmatprep.subr.mxu0 %v127
    %154 = vmatpush1.msra.mxu0 %v126
    %155 = vmatprep.subr.mxu0 %v129
    %156 = vmatpush1.msra.mxu0 %v128
    %157 = vmatprep.subr.mxu0 0.0
    %158 = vmatpush1.msra.mxu0 0.0
    %159 = vmatprep.subr.mxu0 0.0
    %160 = vmatpush1.msra.mxu0 0.0
    %161 = vmatprep.subr.mxu0 0.0
    %162 = vmatpush1.msra.mxu0 0.0
    %163 = vmatprep.subr.mxu0 0.0
    %164 = vmatpush1.msra.mxu0 0.0
    %165 = vmatprep.subr.mxu0 0.0
    %166 = vmatpush1.msra.mxu0 0.0
    %167 = vmatprep.subr.mxu0 0.0
    %168 = vmatpush1.msra.mxu0 0.0
    %169 = vmatprep.subr.mxu0 0.0
    %170 = vmatpush1.msra.mxu0 0.0
    %171 = vmatprep.subr.mxu0 0.0
    %172 = vmatpush1.msra.mxu0 0.0
    %173 = vmatprep.subr.mxu0 0.0
    %174 = vmatpush1.msra.mxu0 0.0
    %175 = vmatprep.subr.mxu0 0.0
    %176 = vmatpush1.msra.mxu0 0.0
    %177 = vmatprep.subr.mxu0 0.0
    %178 = vmatpush1.msra.mxu0 0.0
    %179 = vmatprep.subr.mxu0 0.0
    %180 = vmatpush1.msra.mxu0 0.0
    %181 = vmatprep.subr.mxu0 0.0
    %182 = vmatpush1.msra.mxu0 0.0
    %183 = vmatprep.subr.mxu0 0.0
    %184 = vmatpush1.msra.mxu0 0.0
    %185 = vmatprep.subr.mxu0 0.0
    %186 = vmatpush1.msra.mxu0 0.0
    %187 = vmatprep.subr.mxu0 0.0
    %188 = vmatpush1.msra.mxu0 0.0
    %189 = vmatprep.subr.mxu0 0.0
    %190 = vmatpush1.msra.mxu0 0.0
    %191 = vmatprep.subr.mxu0 0.0
    %192 = vmatpush1.msra.mxu0 0.0
    %193 = vmatprep.subr.mxu0 0.0
    %194 = vmatpush1.msra.mxu0 0.0
    %195 = vmatprep.subr.mxu0 0.0
    %196 = vmatpush1.msra.mxu0 0.0
    %197 = vmatprep.subr.mxu0 0.0
    %198 = vmatpush1.msra.mxu0 0.0
    %199 = vmatprep.subr.mxu0 0.0
    %200 = vmatpush1.msra.mxu0 0.0
    %201 = vmatprep.subr.mxu0 0.0
    %202 = vmatpush1.msra.mxu0 0.0
    %203 = vmatprep.subr.mxu0 0.0
    %204 = vmatpush1.msra.mxu0 0.0
    %205 = vmatprep.subr.mxu0 0.0
    %206 = vmatpush1.msra.mxu0 0.0
    %207 = vmatprep.subr.mxu0 0.0
    %208 = vmatpush1.msra.mxu0 0.0
    %209 = vmatprep.subr.mxu0 0.0
    %210 = vmatpush1.msra.mxu0 0.0
    %211 = vmatprep.subr.mxu0 0.0
    %212 = vmatpush1.msra.mxu0 0.0
    %213 = vmatprep.mubr.f32.mxu0 0.0
    %214 = vmatmul.mubr.f32.gmra.mrb[0].mxu0 %v144
    %v215 = vpop.f32.mrb[0].mxu0
    %v216 = vadd.f32 %v135, %v215
    %v217 = vpop.f32.mrb[0].mxu0
    %v218 = vadd.f32 %v139, %v217
    %219 = vmatprep.mubr.f32.mxu0 0.0
    %220 = vmatmul.mubr.f32.gmra.mrb[0].mxu0 %v147
    %v221 = vpop.f32.mrb[0].mxu0
    %v222 = vadd.f32 %v135, %v221
    %v223 = vpop.f32.mrb[0].mxu0
    %v224 = vadd.f32 %v139, %v223
    %225 = vdwg.mxu0
    %v226 = vmax.f32 %v216, 0.0
    %v227 = vmax.f32 %v218, 0.0
    %v228 = vmax.f32 %v222, 0.0
    %v229 = vmax.f32 %v224, 0.0
    %v230 = vld [vmem:[#allocation6] sm:$0xff]
    %v231 = vld [vmem:[#allocation6 + $0x8] sm:$0xff]
    %v232 = vld [vmem:[#allocation6 + $0x10] sm:$0xff]
    %v233 = vld [vmem:[#allocation6 + $0x18] sm:$0xff]
    %v234 = vld [vmem:[#allocation6 + $0x20] sm:$0xff]
    %v235 = vld [vmem:[#allocation6 + $0x28] sm:$0xff]
    %v236 = vld [vmem:[#allocation6 + $0x30] sm:$0xff]
    %v237 = vld [vmem:[#allocation6 + $0x38] sm:$0xff]
    %v238 = vld [vmem:[#allocation6 + $0x40] sm:$0xff]
    %v239 = vld [vmem:[#allocation6 + $0x48] sm:$0xff]
    %v240 = vld [vmem:[#allocation6 + $0x50] sm:$0xff]
    %v241 = vld [vmem:[#allocation6 + $0x58] sm:$0xff]
    %v242 = vld [vmem:[#allocation6 + $0x60] sm:$0xff]
    %v243 = vld [vmem:[#allocation6 + $0x68] sm:$0xff]
    %v244 = vld [vmem:[#allocation6 + $0x70] sm:$0xff]
    %v245 = vld [vmem:[#allocation6 + $0x78] sm:$0xff]
    %v246 = vld [vmem:[#allocation6 + $0x80] sm:$0xff]
    %v247 = vld [vmem:[#allocation6 + $0x88] sm:$0xff]
    %v248 = vld [vmem:[#allocation6 + $0x90] sm:$0xff]
    %v249 = vld [vmem:[#allocation6 + $0x98] sm:$0xff]
    %v250 = vld [vmem:[#allocation6 + $0xa0] sm:$0xff]
    %v251 = vld [vmem:[#allocation6 + $0xa8] sm:$0xff]
    %v252 = vld [vmem:[#allocation6 + $0xb0] sm:$0xff]
    %v253 = vld [vmem:[#allocation6 + $0xb8] sm:$0xff]
    %v254 = vld [vmem:[#allocation6 + $0xc0] sm:$0xff]
    %v255 = vld [vmem:[#allocation6 + $0xc8] sm:$0xff]
    %v256 = vld [vmem:[#allocation6 + $0xd0] sm:$0xff]
    %v257 = vld [vmem:[#allocation6 + $0xd8] sm:$0xff]
    %v258 = vld [vmem:[#allocation6 + $0xe0] sm:$0xff]
    %v259 = vld [vmem:[#allocation6 + $0xe8] sm:$0xff]
    %v260 = vld [vmem:[#allocation6 + $0xf0] sm:$0xff]
    %v261 = vld [vmem:[#allocation6 + $0xf8] sm:$0xff]
    %v262 = vld [vmem:[%s4] sm:$0x1]
    %v264 = vlaneseq
    %v265 = vshrl.u32 %v264, 7
    %v266 = vsub.s32 0, %v265
    %v267 = vrot.slane %v262, %v266
    %269 = vmatprep.subr.mxu0 0.0
    %270 = vmatpush1.msra.mxu0 %v230
    %271 = vmatprep.subr.mxu0 0.0
    %272 = vmatpush1.msra.mxu0 %v231
    %273 = vmatprep.subr.mxu0 0.0
    %274 = vmatpush1.msra.mxu0 %v232
    %275 = vmatprep.subr.mxu0 0.0
    %276 = vmatpush1.msra.mxu0 %v233
    %277 = vmatprep.subr.mxu0 0.0
    %278 = vmatpush1.msra.mxu0 %v234
    %279 = vmatprep.subr.mxu0 0.0
    %280 = vmatpush1.msra.mxu0 %v235
    %281 = vmatprep.subr.mxu0 0.0
    %282 = vmatpush1.msra.mxu0 %v236
    %283 = vmatprep.subr.mxu0 0.0
    %284 = vmatpush1.msra.mxu0 %v237
    %285 = vmatprep.subr.mxu0 0.0
    %286 = vmatpush1.msra.mxu0 %v238
    %287 = vmatprep.subr.mxu0 0.0
    %288 = vmatpush1.msra.mxu0 %v239
    %289 = vmatprep.subr.mxu0 0.0
    %290 = vmatpush1.msra.mxu0 %v240
    %291 = vmatprep.subr.mxu0 0.0
    %292 = vmatpush1.msra.mxu0 %v241
    %293 = vmatprep.subr.mxu0 0.0
    %294 = vmatpush1.msra.mxu0 %v242
    %295 = vmatprep.subr.mxu0 0.0
    %296 = vmatpush1.msra.mxu0 %v243
    %297 = vmatprep.subr.mxu0 0.0
    %298 = vmatpush1.msra.mxu0 %v244
    %299 = vmatprep.subr.mxu0 0.0
    %300 = vmatpush1.msra.mxu0 %v245
    %301 = vmatprep.subr.mxu0 0.0
    %302 = vmatpush1.msra.mxu0 %v246
    %303 = vmatprep.subr.mxu0 0.0
    %304 = vmatpush1.msra.mxu0 %v247
    %305 = vmatprep.subr.mxu0 0.0
    %306 = vmatpush1.msra.mxu0 %v248
    %307 = vmatprep.subr.mxu0 0.0
    %308 = vmatpush1.msra.mxu0 %v249
    %309 = vmatprep.subr.mxu0 0.0
    %310 = vmatpush1.msra.mxu0 %v250
    %311 = vmatprep.subr.mxu0 0.0
    %312 = vmatpush1.msra.mxu0 %v251
    %313 = vmatprep.subr.mxu0 0.0
    %314 = vmatpush1.msra.mxu0 %v252
    %315 = vmatprep.subr.mxu0 0.0
    %316 = vmatpush1.msra.mxu0 %v253
    %317 = vmatprep.subr.mxu0 0.0
    %318 = vmatpush1.msra.mxu0 %v254
    %319 = vmatprep.subr.mxu0 0.0
    %320 = vmatpush1.msra.mxu0 %v255
    %321 = vmatprep.subr.mxu0 0.0
    %322 = vmatpush1.msra.mxu0 %v256
    %323 = vmatprep.subr.mxu0 0.0
    %324 = vmatpush1.msra.mxu0 %v257
    %325 = vmatprep.subr.mxu0 0.0
    %326 = vmatpush1.msra.mxu0 %v258
    %327 = vmatprep.subr.mxu0 0.0
    %328 = vmatpush1.msra.mxu0 %v259
    %329 = vmatprep.subr.mxu0 0.0
    %330 = vmatpush1.msra.mxu0 %v260
    %331 = vmatprep.subr.mxu0 0.0
    %332 = vmatpush1.msra.mxu0 %v261
    %333 = vmatprep.mubr.f32.mxu0 %v227
    %334 = vmatmul.mubr.f32.gmra.mrb[0].mxu0 %v226
    %v335 = vpop.f32.mrb[0].mxu0
    %v336 = vadd.f32 %v267, %v335
    %v337 = vpop.f32.mrb[0].mxu0
    %338 = vmatprep.mubr.f32.mxu0 %v229
    %339 = vmatmul.mubr.f32.gmra.mrb[0].mxu0 %v228
    %v340 = vpop.f32.mrb[0].mxu0
    %v341 = vadd.f32 %v267, %v340
    %v342 = vpop.f32.mrb[0].mxu0
    %343 = vdwg.mxu0
    %v344 = vmax.f32 %v336, 0.0
    %v345 = vmax.f32 %v341, 0.0
    %v346 = vld [vmem:[#allocation7] sm:$0xff]
    %v347 = vld [vmem:[#allocation7 + $0x8] sm:$0xff]
    %v348 = vld [vmem:[#allocation7 + $0x10] sm:$0xff]
    %v349 = vld [vmem:[#allocation7 + $0x18] sm:$0xff]
    %v350 = vld [vmem:[#allocation7 + $0x20] sm:$0xff]
    %v351 = vld [vmem:[#allocation7 + $0x28] sm:$0xff]
    %v352 = vld [vmem:[#allocation7 + $0x30] sm:$0xff]
    %v353 = vld [vmem:[#allocation7 + $0x38] sm:$0xff]
    %v354 = vld [vmem:[#allocation7 + $0x40] sm:$0xff]
    %v355 = vld [vmem:[#allocation7 + $0x48] sm:$0xff]
    %v356 = vld [vmem:[#allocation7 + $0x50] sm:$0xff]
    %v357 = vld [vmem:[#allocation7 + $0x58] sm:$0xff]
    %v358 = vld [vmem:[#allocation7 + $0x60] sm:$0xff]
    %v359 = vld [vmem:[#allocation7 + $0x68] sm:$0xff]
    %v360 = vld [vmem:[#allocation7 + $0x70] sm:$0xff]
    %v361 = vld [vmem:[#allocation7 + $0x78] sm:$0xff]
    %v362 = vld [vmem:[#allocation7 + $0x80] sm:$0xff]
    %v363 = vld [vmem:[#allocation7 + $0x88] sm:$0xff]
    %v364 = vld [vmem:[#allocation7 + $0x90] sm:$0xff]
    %v365 = vld [vmem:[#allocation7 + $0x98] sm:$0xff]
    %v366 = vld [vmem:[#allocation7 + $0xa0] sm:$0xff]
    %v367 = vld [vmem:[#allocation7 + $0xa8] sm:$0xff]
    %v368 = vld [vmem:[#allocation7 + $0xb0] sm:$0xff]
    %v369 = vld [vmem:[#allocation7 + $0xb8] sm:$0xff]
    %v370 = vld [vmem:[#allocation7 + $0xc0] sm:$0xff]
    %v371 = vld [vmem:[#allocation7 + $0xc8] sm:$0xff]
    %v372 = vld [vmem:[#allocation7 + $0xd0] sm:$0xff]
    %v373 = vld [vmem:[#allocation7 + $0xd8] sm:$0xff]
    %v374 = vld [vmem:[#allocation7 + $0xe0] sm:$0xff]
    %v375 = vld [vmem:[#allocation7 + $0xe8] sm:$0xff]
    %v376 = vld [vmem:[#allocation7 + $0xf0] sm:$0xff]
    %v377 = vld [vmem:[#allocation7 + $0xf8] sm:$0xff]
    %v378 = vld [vmem:[%s6] sm:$0x3]
    %v380 = vlaneseq
    %v381 = vshrl.u32 %v380, 7
    %v382 = vsub.s32 0, %v381
    %v383 = vrot.slane %v378, %v382
    %v384 = vlaneseq
    %v385 = vshrl.u32 %v384, 7
    %v386 = vsub.s32 1, %v385
    %v387 = vrot.slane %v378, %v386
    %390 = vmatprep.subr.mxu0 %v347
    %391 = vmatpush1.msra.mxu0 %v346
    %392 = vmatprep.subr.mxu0 %v349
    %393 = vmatpush1.msra.mxu0 %v348
    %394 = vmatprep.subr.mxu0 %v351
    %395 = vmatpush1.msra.mxu0 %v350
    %396 = vmatprep.subr.mxu0 %v353
    %397 = vmatpush1.msra.mxu0 %v352
    %398 = vmatprep.subr.mxu0 %v355
    %399 = vmatpush1.msra.mxu0 %v354
    %400 = vmatprep.subr.mxu0 %v357
    %401 = vmatpush1.msra.mxu0 %v356
    %402 = vmatprep.subr.mxu0 %v359
    %403 = vmatpush1.msra.mxu0 %v358
    %404 = vmatprep.subr.mxu0 %v361
    %405 = vmatpush1.msra.mxu0 %v360
    %406 = vmatprep.subr.mxu0 %v363
    %407 = vmatpush1.msra.mxu0 %v362
    %408 = vmatprep.subr.mxu0 %v365
    %409 = vmatpush1.msra.mxu0 %v364
    %410 = vmatprep.subr.mxu0 %v367
    %411 = vmatpush1.msra.mxu0 %v366
    %412 = vmatprep.subr.mxu0 %v369
    %413 = vmatpush1.msra.mxu0 %v368
    %414 = vmatprep.subr.mxu0 %v371
    %415 = vmatpush1.msra.mxu0 %v370
    %416 = vmatprep.subr.mxu0 %v373
    %417 = vmatpush1.msra.mxu0 %v372
    %418 = vmatprep.subr.mxu0 %v375
    %419 = vmatpush1.msra.mxu0 %v374
    %420 = vmatprep.subr.mxu0 %v377
    %421 = vmatpush1.msra.mxu0 %v376
    %422 = vmatprep.subr.mxu0 0.0
    %423 = vmatpush1.msra.mxu0 0.0
    %424 = vmatprep.subr.mxu0 0.0
    %425 = vmatpush1.msra.mxu0 0.0
    %426 = vmatprep.subr.mxu0 0.0
    %427 = vmatpush1.msra.mxu0 0.0
    %428 = vmatprep.subr.mxu0 0.0
    %429 = vmatpush1.msra.mxu0 0.0
    %430 = vmatprep.subr.mxu0 0.0
    %431 = vmatpush1.msra.mxu0 0.0
    %432 = vmatprep.subr.mxu0 0.0
    %433 = vmatpush1.msra.mxu0 0.0
    %434 = vmatprep.subr.mxu0 0.0
    %435 = vmatpush1.msra.mxu0 0.0
    %436 = vmatprep.subr.mxu0 0.0
    %437 = vmatpush1.msra.mxu0 0.0
    %438 = vmatprep.subr.mxu0 0.0
    %439 = vmatpush1.msra.mxu0 0.0
    %440 = vmatprep.subr.mxu0 0.0
    %441 = vmatpush1.msra.mxu0 0.0
    %442 = vmatprep.subr.mxu0 0.0
    %443 = vmatpush1.msra.mxu0 0.0
    %444 = vmatprep.subr.mxu0 0.0
    %445 = vmatpush1.msra.mxu0 0.0
    %446 = vmatprep.subr.mxu0 0.0
    %447 = vmatpush1.msra.mxu0 0.0
    %448 = vmatprep.subr.mxu0 0.0
    %449 = vmatpush1.msra.mxu0 0.0
    %450 = vmatprep.subr.mxu0 0.0
    %451 = vmatpush1.msra.mxu0 0.0
    %452 = vmatprep.subr.mxu0 0.0
    %453 = vmatpush1.msra.mxu0 0.0
    %454 = vmatprep.mubr.f32.mxu0 0.0
    %455 = vmatmul.mubr.f32.gmra.mrb[0].mxu0 %v344
    %v456 = vpop.f32.mrb[0].mxu0
    %v457 = vadd.f32 %v383, %v456
    %v458 = vpop.f32.mrb[0].mxu0
    %v459 = vadd.f32 %v387, %v458
    %460 = vmatprep.mubr.f32.mxu0 0.0
    %461 = vmatmul.mubr.f32.gmra.mrb[0].mxu0 %v345
    %v462 = vpop.f32.mrb[0].mxu0
    %v463 = vadd.f32 %v383, %v462
    %v464 = vpop.f32.mrb[0].mxu0
    %v465 = vadd.f32 %v387, %v464
    %466 = vdwg.mxu0
    %v467 = vmax.f32 %v457, 0.0
    %v468 = vmax.f32 %v459, 0.0
    %v469 = vmax.f32 %v463, 0.0
    %v470 = vmax.f32 %v465, 0.0
    %v471 = vld [vmem:[#allocation9] sm:$0xff]
    %v472 = vld [vmem:[#allocation9 + $0x8] sm:$0xff]
    %v473 = vld [vmem:[#allocation9 + $0x10] sm:$0xff]
    %v474 = vld [vmem:[#allocation9 + $0x18] sm:$0xff]
    %v475 = vld [vmem:[#allocation9 + $0x20] sm:$0xff]
    %v476 = vld [vmem:[#allocation9 + $0x28] sm:$0xff]
    %v477 = vld [vmem:[#allocation9 + $0x30] sm:$0xff]
    %v478 = vld [vmem:[#allocation9 + $0x38] sm:$0xff]
    %v479 = vld [vmem:[#allocation9 + $0x40] sm:$0xff]
    %v480 = vld [vmem:[#allocation9 + $0x48] sm:$0xff]
    %v481 = vld [vmem:[#allocation9 + $0x50] sm:$0xff]
    %v482 = vld [vmem:[#allocation9 + $0x58] sm:$0xff]
    %v483 = vld [vmem:[#allocation9 + $0x60] sm:$0xff]
    %v484 = vld [vmem:[#allocation9 + $0x68] sm:$0xff]
    %v485 = vld [vmem:[#allocation9 + $0x70] sm:$0xff]
    %v486 = vld [vmem:[#allocation9 + $0x78] sm:$0xff]
    %v487 = vld [vmem:[#allocation9 + $0x80] sm:$0xff]
    %v488 = vld [vmem:[#allocation9 + $0x88] sm:$0xff]
    %v489 = vld [vmem:[#allocation9 + $0x90] sm:$0xff]
    %v490 = vld [vmem:[#allocation9 + $0x98] sm:$0xff]
    %v491 = vld [vmem:[#allocation9 + $0xa0] sm:$0xff]
    %v492 = vld [vmem:[#allocation9 + $0xa8] sm:$0xff]
    %v493 = vld [vmem:[#allocation9 + $0xb0] sm:$0xff]
    %v494 = vld [vmem:[#allocation9 + $0xb8] sm:$0xff]
    %v495 = vld [vmem:[#allocation9 + $0xc0] sm:$0xff]
    %v496 = vld [vmem:[#allocation9 + $0xc8] sm:$0xff]
    %v497 = vld [vmem:[#allocation9 + $0xd0] sm:$0xff]
    %v498 = vld [vmem:[#allocation9 + $0xd8] sm:$0xff]
    %v499 = vld [vmem:[#allocation9 + $0xe0] sm:$0xff]
    %v500 = vld [vmem:[#allocation9 + $0xe8] sm:$0xff]
    %v501 = vld [vmem:[#allocation9 + $0xf0] sm:$0xff]
    %v502 = vld [vmem:[#allocation9 + $0xf8] sm:$0xff]
    %v503 = vld [vmem:[%s8] sm:$0x1]
    %v505 = vlaneseq
    %v506 = vshrl.u32 %v505, 7
    %v507 = vsub.s32 0, %v506
    %v508 = vrot.slane %v503, %v507
    %510 = vmatprep.subr.mxu0 0.0
    %511 = vmatpush1.msra.mxu0 %v471
    %512 = vmatprep.subr.mxu0 0.0
    %513 = vmatpush1.msra.mxu0 %v472
    %514 = vmatprep.subr.mxu0 0.0
    %515 = vmatpush1.msra.mxu0 %v473
    %516 = vmatprep.subr.mxu0 0.0
    %517 = vmatpush1.msra.mxu0 %v474
    %518 = vmatprep.subr.mxu0 0.0
    %519 = vmatpush1.msra.mxu0 %v475
    %520 = vmatprep.subr.mxu0 0.0
    %521 = vmatpush1.msra.mxu0 %v476
    %522 = vmatprep.subr.mxu0 0.0
    %523 = vmatpush1.msra.mxu0 %v477
    %524 = vmatprep.subr.mxu0 0.0
    %525 = vmatpush1.msra.mxu0 %v478
    %526 = vmatprep.subr.mxu0 0.0
    %527 = vmatpush1.msra.mxu0 %v479
    %528 = vmatprep.subr.mxu0 0.0
    %529 = vmatpush1.msra.mxu0 %v480
    %530 = vmatprep.subr.mxu0 0.0
    %531 = vmatpush1.msra.mxu0 %v481
    %532 = vmatprep.subr.mxu0 0.0
    %533 = vmatpush1.msra.mxu0 %v482
    %534 = vmatprep.subr.mxu0 0.0
    %535 = vmatpush1.msra.mxu0 %v483
    %536 = vmatprep.subr.mxu0 0.0
    %537 = vmatpush1.msra.mxu0 %v484
    %538 = vmatprep.subr.mxu0 0.0
    %539 = vmatpush1.msra.mxu0 %v485
    %540 = vmatprep.subr.mxu0 0.0
    %541 = vmatpush1.msra.mxu0 %v486
    %542 = vmatprep.subr.mxu0 0.0
    %543 = vmatpush1.msra.mxu0 %v487
    %544 = vmatprep.subr.mxu0 0.0
    %545 = vmatpush1.msra.mxu0 %v488
    %546 = vmatprep.subr.mxu0 0.0
    %547 = vmatpush1.msra.mxu0 %v489
    %548 = vmatprep.subr.mxu0 0.0
    %549 = vmatpush1.msra.mxu0 %v490
    %550 = vmatprep.subr.mxu0 0.0
    %551 = vmatpush1.msra.mxu0 %v491
    %552 = vmatprep.subr.mxu0 0.0
    %553 = vmatpush1.msra.mxu0 %v492
    %554 = vmatprep.subr.mxu0 0.0
    %555 = vmatpush1.msra.mxu0 %v493
    %556 = vmatprep.subr.mxu0 0.0
    %557 = vmatpush1.msra.mxu0 %v494
    %558 = vmatprep.subr.mxu0 0.0
    %559 = vmatpush1.msra.mxu0 %v495
    %560 = vmatprep.subr.mxu0 0.0
    %561 = vmatpush1.msra.mxu0 %v496
    %562 = vmatprep.subr.mxu0 0.0
    %563 = vmatpush1.msra.mxu0 %v497
    %564 = vmatprep.subr.mxu0 0.0
    %565 = vmatpush1.msra.mxu0 %v498
    %566 = vmatprep.subr.mxu0 0.0
    %567 = vmatpush1.msra.mxu0 %v499
    %568 = vmatprep.subr.mxu0 0.0
    %569 = vmatpush1.msra.mxu0 %v500
    %570 = vmatprep.subr.mxu0 0.0
    %571 = vmatpush1.msra.mxu0 %v501
    %572 = vmatprep.subr.mxu0 0.0
    %573 = vmatpush1.msra.mxu0 %v502
    %574 = vmatprep.mubr.f32.mxu0 %v468
    %575 = vmatmul.mubr.f32.gmra.mrb[0].mxu0 %v467
    %v576 = vpop.f32.mrb[0].mxu0
    %v577 = vadd.f32 %v508, %v576
    %v578 = vpop.f32.mrb[0].mxu0
    %579 = vmatprep.mubr.f32.mxu0 %v470
    %580 = vmatmul.mubr.f32.gmra.mrb[0].mxu0 %v469
    %v581 = vpop.f32.mrb[0].mxu0
    %v582 = vadd.f32 %v508, %v581
    %v583 = vpop.f32.mrb[0].mxu0
    %584 = vdwg.mxu0
    %v585 = vmax.f32 %v577, 0.0
    %v586 = vmax.f32 %v582, 0.0
    %v587 = vld [vmem:[#allocation10] sm:$0xff]
    %v588 = vld [vmem:[#allocation10 + $0x8] sm:$0xff]
    %v589 = vld [vmem:[#allocation10 + $0x10] sm:$0xff]
    %v590 = vld [vmem:[#allocation10 + $0x18] sm:$0xff]
    %v591 = vld [vmem:[#allocation10 + $0x20] sm:$0xff]
    %v592 = vld [vmem:[#allocation10 + $0x28] sm:$0xff]
    %v593 = vld [vmem:[#allocation10 + $0x30] sm:$0xff]
    %v594 = vld [vmem:[#allocation10 + $0x38] sm:$0xff]
    %v595 = vld [vmem:[#allocation10 + $0x40] sm:$0xff]
    %v596 = vld [vmem:[#allocation10 + $0x48] sm:$0xff]
    %v597 = vld [vmem:[#allocation10 + $0x50] sm:$0xff]
    %v598 = vld [vmem:[#allocation10 + $0x58] sm:$0xff]
    %v599 = vld [vmem:[#allocation10 + $0x60] sm:$0xff]
    %v600 = vld [vmem:[#allocation10 + $0x68] sm:$0xff]
    %v601 = vld [vmem:[#allocation10 + $0x70] sm:$0xff]
    %v602 = vld [vmem:[#allocation10 + $0x78] sm:$0xff]
    %v603 = vld [vmem:[%s10] sm:$0x1]
    %v605 = vlaneseq
    %v606 = vshrl.u32 %v605, 7
    %v607 = vsub.s32 0, %v606
    %v608 = vrot.slane %v603, %v607
    %610 = vmatprep.subr.mxu0 0.0
    %611 = vmatpush1.msra.mxu0 %v587
    %612 = vmatprep.subr.mxu0 0.0
    %613 = vmatpush1.msra.mxu0 %v588
    %614 = vmatprep.subr.mxu0 0.0
    %615 = vmatpush1.msra.mxu0 %v589
    %616 = vmatprep.subr.mxu0 0.0
    %617 = vmatpush1.msra.mxu0 %v590
    %618 = vmatprep.subr.mxu0 0.0
    %619 = vmatpush1.msra.mxu0 %v591
    %620 = vmatprep.subr.mxu0 0.0
    %621 = vmatpush1.msra.mxu0 %v592
    %622 = vmatprep.subr.mxu0 0.0
    %623 = vmatpush1.msra.mxu0 %v593
    %624 = vmatprep.subr.mxu0 0.0
    %625 = vmatpush1.msra.mxu0 %v594
    %626 = vmatprep.subr.mxu0 0.0
    %627 = vmatpush1.msra.mxu0 %v595
    %628 = vmatprep.subr.mxu0 0.0
    %629 = vmatpush1.msra.mxu0 %v596
    %630 = vmatprep.subr.mxu0 0.0
    %631 = vmatpush1.msra.mxu0 %v597
    %632 = vmatprep.subr.mxu0 0.0
    %633 = vmatpush1.msra.mxu0 %v598
    %634 = vmatprep.subr.mxu0 0.0
    %635 = vmatpush1.msra.mxu0 %v599
    %636 = vmatprep.subr.mxu0 0.0
    %637 = vmatpush1.msra.mxu0 %v600
    %638 = vmatprep.subr.mxu0 0.0
    %639 = vmatpush1.msra.mxu0 %v601
    %640 = vmatprep.subr.mxu0 0.0
    %641 = vmatpush1.msra.mxu0 %v602
    %642 = vmatprep.subr.mxu0 0.0
    %643 = vmatpush1.msra.mxu0 0.0
    %644 = vmatprep.subr.mxu0 0.0
    %645 = vmatpush1.msra.mxu0 0.0
    %646 = vmatprep.subr.mxu0 0.0
    %647 = vmatpush1.msra.mxu0 0.0
    %648 = vmatprep.subr.mxu0 0.0
    %649 = vmatpush1.msra.mxu0 0.0
    %650 = vmatprep.subr.mxu0 0.0
    %651 = vmatpush1.msra.mxu0 0.0
    %652 = vmatprep.subr.mxu0 0.0
    %653 = vmatpush1.msra.mxu0 0.0
    %654 = vmatprep.subr.mxu0 0.0
    %655 = vmatpush1.msra.mxu0 0.0
    %656 = vmatprep.subr.mxu0 0.0
    %657 = vmatpush1.msra.mxu0 0.0
    %658 = vmatprep.subr.mxu0 0.0
    %659 = vmatpush1.msra.mxu0 0.0
    %660 = vmatprep.subr.mxu0 0.0
    %661 = vmatpush1.msra.mxu0 0.0
    %662 = vmatprep.subr.mxu0 0.0
    %663 = vmatpush1.msra.mxu0 0.0
    %664 = vmatprep.subr.mxu0 0.0
    %665 = vmatpush1.msra.mxu0 0.0
    %666 = vmatprep.subr.mxu0 0.0
    %667 = vmatpush1.msra.mxu0 0.0
    %668 = vmatprep.subr.mxu0 0.0
    %669 = vmatpush1.msra.mxu0 0.0
    %670 = vmatprep.subr.mxu0 0.0
    %671 = vmatpush1.msra.mxu0 0.0
    %672 = vmatprep.subr.mxu0 0.0
    %673 = vmatpush1.msra.mxu0 0.0
    %674 = vmatprep.mubr.f32.mxu0 0.0
    %675 = vmatmul.mubr.f32.gmra.mrb[0].mxu0 %v585
    %v676 = vpop.f32.mrb[0].mxu0
    %v677 = vadd.f32 %v608, %v676
    %v678 = vpop.f32.mrb[0].mxu0
    %679 = vmatprep.mubr.f32.mxu0 0.0
    %680 = vmatmul.mubr.f32.gmra.mrb[0].mxu0 %v586
    %v681 = vpop.f32.mrb[0].mxu0
    %v682 = vadd.f32 %v608, %v681
    %v683 = vpop.f32.mrb[0].mxu0
    %684 = vdwg.mxu0
    %685 = vmax.xlane.f32.xlu0 %v677
    %v686 = vpop.xlane.xlu0 %685
    %687 = vmax.xlane.f32.xlu0 %v682
    %v688 = vpop.xlane.xlu0 %687
    %v689 = vsub.f32 %v677, %v686
    %v690 = vsub.f32 %v682, %v688
    %v691 = vmul.f32 %v689, 1.442695
    %v692 = vpow.pop %v691
    %v693 = vmul.f32 %v690, 1.442695
    %v694 = vpow.pop %v693
    %695 = vadd.xlane.f32.xlu0 %v692
    %v696 = vpop.xlane.xlu0 %695
    %697 = vadd.xlane.f32.xlu0 %v694
    %v698 = vpop.xlane.xlu0 %697
    %v699 = vrcp.pop %v696
    %v700 = vrcp.pop %v698
    %v701 = vmul.f32 %v692, %v699
    %v702 = vmul.f32 %v694, %v700
    %703 = vst [vmem:[%s11] sm:$0xff] %v701
    %704 = vst [vmem:[%s11 + $0x8] sm:$0xff] %v702
    // Predicated region
    $region70: #{_run.1} parent=1 // pred_check
      _
    $region71: #{_run.1} parent=1 // pred_check_branch
      %706 = sbr.rel (0) target = $region73
    $region72: #{_run.1} parent=1 // pred_region
      _
    $region73: #{_run.1} parent=1 // pred_fallthru
      _
    // Predicated region
    $region74: #{_run.1} parent=1 // pred_check
      _
    $region75: #{_run.1} parent=1 // pred_check_branch
      %708 = sbr.rel (0) target = $region77
    $region76: #{_run.1} parent=1 // pred_region
      _
    $region77: #{_run.1} parent=1 // pred_fallthru
      _
    %709 = vsyncpa [#allocation3], 1
    %710 = vsyncpa [#allocation5], 1
    %711 = vsyncpa [#allocation8], 1
    %712 = vsyncpa [#allocation11], 1

</llo_original>
